<compile_context>
chip_gen: v7x
topology: tpu7x:2x2x1
jax: 0.10.0
libtpu: 0.0.40
codegen_flags: <defaults>
</compile_context>

<pallas_src>
import functools

import jax
import jax.numpy as jnp
from jax.experimental import pallas as pl
from jax.experimental.pallas import tpu as pltpu

LOG_STD_MIN = -20.0
LOG_STD_MAX = 2.0

_LANE = 128
_SUBLANE = 8


def _round_up(x, m):
    return ((x + m - 1) // m) * m


def _cdiv(a, b):
    return -(-a // b)


def policy_kernel(x_ref, w1_ref, w2_ref, wh_ref, b_ref, out_ref, *, h1p, h2p):
    """Fused 2-layer MLP + combined (mean | log_std) head.

    x_ref   : (TB, state_dim)              batch tile of states (f32)
    w1_ref  : (state_dim, h1p)             h1p = hidden1 padded to 128
    w2_ref  : (h1p, h2p)                   h2p = hidden2 padded to 128
    wh_ref  : (h2p, HEAD_PAD)  [:, :A] = mean head, [:, A:2A] = log_std head
    b_ref   : (4, BIAS_PAD) f32  row0=b1, row1=b2, row2=head bias, row3=log_std mask
    out_ref : (TB, HEAD_PAD)               lane-dense combined output
    """
    head_pad = out_ref.shape[-1]

    w1 = w1_ref[...]
    w2 = w2_ref[...]
    wh = wh_ref[...]

    # MXU matmuls in the weight dtype (bf16 by default); f32 accumulation.
    x = x_ref[...].astype(w1.dtype)
    h1 = jnp.dot(x, w1, preferred_element_type=jnp.float32)
    h1 = jnp.maximum(h1 + b_ref[0:1, :h1p], 0.0)              # f32 VPU, full lanes

    h2 = jnp.dot(h1.astype(w2.dtype), w2, preferred_element_type=jnp.float32)
    h2 = jnp.maximum(h2 + b_ref[1:2, :h2p], 0.0)              # f32 VPU, full lanes

    head = jnp.dot(h2.astype(wh.dtype), wh, preferred_element_type=jnp.float32)
    head = head + b_ref[2:3, :head_pad]

    # Precomputed mask row (1.0 on the log_std lanes): clip only those lanes.
    mask = b_ref[3:4, :head_pad]
    clipped = jnp.clip(head, LOG_STD_MIN, LOG_STD_MAX)
    out_ref[...] = jnp.where(mask > 0.5, clipped, head).astype(out_ref.dtype)


def policy_forward(state, params, actions_dim, *, block_b=2048,
                   out_dtype=jnp.float32):
    """state: (B, state_dim) f32. params: dict from pack_params().

    Returns (mean, log_std), each (B, actions_dim) f32.
    """
    B, state_dim = state.shape
    w1, w2, wh, b_all = params["w1"], params["w2"], params["w_head"], params["b_all"]
    h1p = w1.shape[1]
    h2p = w2.shape[1]
    head_pad = wh.shape[1]

    # Balanced batch tiling: as few tiles as block_b allows, but at least 2
    # tiles when B spans >= 2 sublane tiles (so v7x's 2 TensorCores both work).
    n_tiles = max(1, _cdiv(B, block_b))
    if B >= 2 * _SUBLANE:
        n_tiles = max(n_tiles, 2)
    tb = _round_up(_cdiv(B, n_tiles), _SUBLANE)
    nb = _cdiv(B, tb)
    b_pad = nb * tb
    x = state if b_pad == B else jnp.pad(state, ((0, b_pad - B), (0, 0)))

    w_itemsize = jnp.dtype(w1.dtype).itemsize
    out_itemsize = jnp.dtype(out_dtype).itemsize
    flops = 2 * b_pad * (state_dim * h1p + h1p * h2p + h2p * head_pad)
    bytes_accessed = (x.size * x.dtype.itemsize
                      + (w1.size + w2.size + wh.size) * w_itemsize
                      + b_all.size * 4
                      + b_pad * head_pad * out_itemsize)

    # VMEM budget: in/out tiles double-buffered, weights single-buffered.
    vmem_need = (2 * tb * state_dim * 4
                 + 2 * tb * head_pad * out_itemsize
                 + (w1.size + w2.size + wh.size) * w_itemsize
                 + b_all.size * 4)
    vmem_limit = min(64 * 1024 * 1024, max(32 * 1024 * 1024, 4 * vmem_need))

    kernel = functools.partial(policy_kernel, h1p=h1p, h2p=h2p)
    resident = dict(pipeline_mode=pl.Buffered(1))   # never re-fetched

    out = pl.pallas_call(
        kernel,
        out_shape=jax.ShapeDtypeStruct((b_pad, head_pad), out_dtype),
        grid=(nb,),
        in_specs=[
            pl.BlockSpec((tb, state_dim), lambda i: (i, 0)),      # batch-tiled
            pl.BlockSpec(w1.shape, lambda i: (0, 0), **resident),  # VMEM-resident
            pl.BlockSpec(w2.shape, lambda i: (0, 0), **resident),
            pl.BlockSpec(wh.shape, lambda i: (0, 0), **resident),
            pl.BlockSpec(b_all.shape, lambda i: (0, 0), **resident),
        ],
        out_specs=pl.BlockSpec((tb, head_pad), lambda i: (i, 0)),
        compiler_params=pltpu.CompilerParams(
            dimension_semantics=("parallel",),
            vmem_limit_bytes=vmem_limit),
        cost_estimate=pl.CostEstimate(flops=flops, transcendentals=0,
                                      bytes_accessed=bytes_accessed),
    )(x, w1, w2, wh, b_all)

    mean = out[:B, :actions_dim].astype(jnp.float32)
    log_std = out[:B, actions_dim:2 * actions_dim].astype(jnp.float32)
    return mean, log_std


def init_params(key, state_dim, actions_dim, hidden_size, hidden_size2,
                init_w=0.003):
    """Raw (unpacked) params mirroring the PyTorch module's __init__.

    linear1/linear2: U(-1/sqrt(fan_in), 1/sqrt(fan_in)) for weight and bias.
    mean/log_std heads: U(-init_w, init_w). Weights stored as (in, out).
    """
    ks = jax.random.split(key, 8)

    def u(k, shape, bound):
        return jax.random.uniform(k, shape, jnp.float32, -bound, bound)

    bnd1 = 1.0 / (state_dim ** 0.5)
    bnd2 = 1.0 / (hidden_size ** 0.5)

    return {
        "w1": u(ks[0], (state_dim, hidden_size), bnd1),
        "b1": u(ks[1], (hidden_size,), bnd1),
        "w2": u(ks[2], (hidden_size, hidden_size2), bnd2),
        "b2": u(ks[3], (hidden_size2,), bnd2),
        "wm": u(ks[4], (hidden_size2, actions_dim), init_w),
        "bm": u(ks[5], (actions_dim,), init_w),
        "ws": u(ks[6], (hidden_size2, actions_dim), init_w),
        "bs": u(ks[7], (actions_dim,), init_w),
    }


def pack_params(raw, weights_dtype=jnp.bfloat16):
    """Pack raw params into kernel-ready form.

    * hidden dims zero-padded to 128 lanes (full-vreg VPU ops, aligned bias).
    * mean/log_std heads fused into one lane-padded (h2p, HEAD_PAD) weight.
    * all biases + the log_std-lane mask packed into one (4, BIAS_PAD) f32 row
      block.  Padded entries are exactly zero so ReLU(0)=0 preserves results.
    """
    s_dim, h1 = raw["w1"].shape
    h2 = raw["w2"].shape[1]
    a = raw["wm"].shape[1]
    h1p = _round_up(h1, _LANE)
    h2p = _round_up(h2, _LANE)
    head_pad = _round_up(2 * a, _LANE)
    bias_pad = max(h1p, h2p, head_pad)

    w1 = jnp.zeros((s_dim, h1p), jnp.float32).at[:, :h1].set(raw["w1"])
    w2 = jnp.zeros((h1p, h2p), jnp.float32).at[:h1, :h2].set(raw["w2"])
    w_head = jnp.zeros((h2p, head_pad), jnp.float32)
    w_head = w_head.at[:h2, :a].set(raw["wm"]).at[:h2, a:2 * a].set(raw["ws"])

    b_all = jnp.zeros((4, bias_pad), jnp.float32)
    b_all = b_all.at[0, :h1].set(raw["b1"])
    b_all = b_all.at[1, :h2].set(raw["b2"])
    b_all = b_all.at[2, :a].set(raw["bm"]).at[2, a:2 * a].set(raw["bs"])
    b_all = b_all.at[3, a:2 * a].set(1.0)   # log_std-lane mask

    return {
        "w1": w1.astype(weights_dtype),
        "w2": w2.astype(weights_dtype),
        "w_head": w_head.astype(weights_dtype),
        "b_all": b_all,  # biases/mask stay f32 (used post f32-accumulation)
    }


def ref_forward(state, raw, dtype=jnp.float32):
    """Plain-JAX reference (same math as the PyTorch forward)."""
    x = state.astype(dtype)
    h1 = jnp.maximum(
        jnp.dot(x, raw["w1"].astype(dtype),
                preferred_element_type=jnp.float32) + raw["b1"], 0.0)
    h2 = jnp.maximum(
        jnp.dot(h1.astype(dtype), raw["w2"].astype(dtype),
                preferred_element_type=jnp.float32) + raw["b2"], 0.0)
    mean = jnp.dot(h2.astype(dtype), raw["wm"].astype(dtype),
                   preferred_element_type=jnp.float32) + raw["bm"]
    log_std = jnp.dot(h2.astype(dtype), raw["ws"].astype(dtype),
                      preferred_element_type=jnp.float32) + raw["bs"]
    return mean, jnp.clip(log_std, LOG_STD_MIN, LOG_STD_MAX)


if __name__ == "__main__":
    # Small shapes consistent with the module's forward.
    B = 8
    state_dim = 16
    actions_dim = 8
    hidden_size = 32
    hidden_size2 = 32
    # hidden_size3 is unused by the module's forward, so it is omitted here.

    key = jax.random.PRNGKey(0)
    k_params, k_state, k_state2 = jax.random.split(key, 3)

    raw = init_params(k_params, state_dim, actions_dim,
                      hidden_size, hidden_size2)
    state = jax.random.normal(k_state, (B, state_dim), jnp.float32)

    # --- f32 weights, f32 output, single-tile grid (exact check) ------------
    params_f32 = pack_params(raw, weights_dtype=jnp.float32)
    mean, log_std = policy_forward(state, params_f32, actions_dim)
    jax.block_until_ready((mean, log_std))

    ref_mean, ref_log_std = ref_forward(state, raw, jnp.float32)
    assert mean.shape == (B, actions_dim) and log_std.shape == (B, actions_dim)
    assert jnp.allclose(mean, ref_mean, atol=1e-5, rtol=1e-5)
    assert jnp.allclose(log_std, ref_log_std, atol=1e-5, rtol=1e-5)

    # --- bf16 weights (default), ragged batch -> 2-tile "parallel" grid -----
    B2 = 20
    state2 = jax.random.normal(k_state2, (B2, state_dim), jnp.float32)
    params_bf16 = pack_params(raw)   # bf16 weights by default
    mean2, log_std2 = policy_forward(state2, params_bf16, actions_dim)
    jax.block_until_ready((mean2, log_std2))

    ref_mean2, ref_log_std2 = ref_forward(state2, raw, jnp.bfloat16)
    assert mean2.shape == (B2, actions_dim) and log_std2.shape == (B2, actions_dim)
    assert jnp.allclose(mean2, ref_mean2, atol=5e-2, rtol=5e-2)
    assert jnp.allclose(log_std2, ref_log_std2, atol=5e-2, rtol=5e-2)

    # --- bf16 output slab (halved output HBM traffic; v5e-targeted) ---------
    mean3, log_std3 = policy_forward(state2, params_bf16, actions_dim,
                                     out_dtype=jnp.bfloat16)
    jax.block_until_ready((mean3, log_std3))
    assert jnp.allclose(mean3, ref_mean2, atol=5e-2, rtol=5e-2)
    assert jnp.allclose(log_std3, ref_log_std2, atol=5e-2, rtol=5e-2)

    print("KERNEL_OK")
</pallas_src>

<mosaic_0001>
module attributes {stable_mosaic.version = 11 : i64} {
  func.func @policy_kernel(%arg0: i32, %arg1: memref<8x16xf32, #tpu.memory_space<vmem>>, %arg2: memref<16x128xf32, #tpu.memory_space<vmem>>, %arg3: memref<128x128xf32, #tpu.memory_space<vmem>>, %arg4: memref<128x128xf32, #tpu.memory_space<vmem>>, %arg5: memref<4x128xf32, #tpu.memory_space<vmem>>, %arg6: memref<8x128xf32, #tpu.memory_space<vmem>>) attributes {dimension_semantics = [#tpu.dimension_semantics<parallel>], iteration_bounds = array<i64: 1>, scalar_prefetch = 0 : i64, scratch_operands = 0 : i64, tpu.core_type = #tpu.core_type<tc>, window_params = [{transform_indices = @transform_0, window_bounds = array<i64: 8, 16>}, {pipeline_mode = #tpu.pipeline_mode<synchronous>, transform_indices = @transform_1, window_bounds = array<i64: 16, 128>}, {pipeline_mode = #tpu.pipeline_mode<synchronous>, transform_indices = @transform_2, window_bounds = array<i64: 128, 128>}, {pipeline_mode = #tpu.pipeline_mode<synchronous>, transform_indices = @transform_3, window_bounds = array<i64: 128, 128>}, {pipeline_mode = #tpu.pipeline_mode<synchronous>, transform_indices = @transform_4, window_bounds = array<i64: 4, 128>}, {transform_indices = @transform_5, window_bounds = array<i64: 8, 128>}]} {
    %c0 = arith.constant 0 : index
    %c0_0 = arith.constant 0 : index
    %0 = vector.load %arg2[%c0, %c0_0] : memref<16x128xf32, #tpu.memory_space<vmem>>, vector<16x128xf32>
    %c0_1 = arith.constant 0 : index
    %c0_2 = arith.constant 0 : index
    %1 = vector.load %arg3[%c0_1, %c0_2] : memref<128x128xf32, #tpu.memory_space<vmem>>, vector<128x128xf32>
    %c0_3 = arith.constant 0 : index
    %c0_4 = arith.constant 0 : index
    %2 = vector.load %arg4[%c0_3, %c0_4] : memref<128x128xf32, #tpu.memory_space<vmem>>, vector<128x128xf32>
    %c0_5 = arith.constant 0 : index
    %c0_6 = arith.constant 0 : index
    %3 = vector.load %arg1[%c0_5, %c0_6] : memref<8x16xf32, #tpu.memory_space<vmem>>, vector<8x16xf32>
    %cst = arith.constant dense<0.000000e+00> : vector<8x128xf32>
    %4 = tpu.matmul %3, %0, %cst {dimension_numbers = #tpu.dot_dimension_numbers<[1], [0], [0], [1], [0, 0, 1, 1], [], []>} : vector<8x16xf32>, vector<16x128xf32>, vector<8x128xf32> -> vector<8x128xf32>
    %c0_7 = arith.constant 0 : index
    %c0_8 = arith.constant 0 : index
    %5 = vector.load %arg5[%c0_7, %c0_8] : memref<4x128xf32, #tpu.memory_space<vmem>>, vector<1x128xf32>
    %6 = vector.broadcast %5 : vector<1x128xf32> to vector<8x128xf32>
    %7 = arith.addf %4, %6 : vector<8x128xf32>
    %cst_9 = arith.constant 0.000000e+00 : f32
    %8 = vector.broadcast %cst_9 : f32 to vector<8x128xf32>
    %9 = arith.maximumf %7, %8 : vector<8x128xf32>
    %cst_10 = arith.constant dense<0.000000e+00> : vector<8x128xf32>
    %10 = tpu.matmul %9, %1, %cst_10 {dimension_numbers = #tpu.dot_dimension_numbers<[1], [0], [0], [1], [0, 0, 1, 1], [], []>} : vector<8x128xf32>, vector<128x128xf32>, vector<8x128xf32> -> vector<8x128xf32>
    %c1 = arith.constant 1 : index
    %c0_11 = arith.constant 0 : index
    %11 = vector.load %arg5[%c1, %c0_11] : memref<4x128xf32, #tpu.memory_space<vmem>>, vector<1x128xf32>
    %12 = vector.broadcast %11 : vector<1x128xf32> to vector<8x128xf32>
    %13 = arith.addf %10, %12 : vector<8x128xf32>
    %cst_12 = arith.constant 0.000000e+00 : f32
    %14 = vector.broadcast %cst_12 : f32 to vector<8x128xf32>
    %15 = arith.maximumf %13, %14 : vector<8x128xf32>
    %cst_13 = arith.constant dense<0.000000e+00> : vector<8x128xf32>
    %16 = tpu.matmul %15, %2, %cst_13 {dimension_numbers = #tpu.dot_dimension_numbers<[1], [0], [0], [1], [0, 0, 1, 1], [], []>} : vector<8x128xf32>, vector<128x128xf32>, vector<8x128xf32> -> vector<8x128xf32>
    %c2 = arith.constant 2 : index
    %c0_14 = arith.constant 0 : index
    %17 = vector.load %arg5[%c2, %c0_14] : memref<4x128xf32, #tpu.memory_space<vmem>>, vector<1x128xf32>
    %18 = vector.broadcast %17 : vector<1x128xf32> to vector<8x128xf32>
    %19 = arith.addf %16, %18 : vector<8x128xf32>
    %c3 = arith.constant 3 : index
    %c0_15 = arith.constant 0 : index
    %20 = vector.load %arg5[%c3, %c0_15] : memref<4x128xf32, #tpu.memory_space<vmem>>, vector<1x128xf32>
    %cst_16 = arith.constant -2.000000e+01 : f32
    %cst_17 = arith.constant 2.000000e+00 : f32
    %21 = vector.broadcast %cst_16 : f32 to vector<8x128xf32>
    %22 = arith.maximumf %21, %19 : vector<8x128xf32>
    %23 = vector.broadcast %cst_17 : f32 to vector<8x128xf32>
    %24 = arith.minimumf %23, %22 : vector<8x128xf32>
    %cst_18 = arith.constant 5.000000e-01 : f32
    %25 = vector.broadcast %cst_18 : f32 to vector<1x128xf32>
    %26 = arith.cmpf ogt, %20, %25 : vector<1x128xf32>
    %27 = vector.shape_cast %26 : vector<1x128xi1> to vector<1x128xi1>
    %28 = vector.broadcast %27 : vector<1x128xi1> to vector<8x128xi1>
    %29 = arith.select %28, %24, %19 : vector<8x128xi1>, vector<8x128xf32>
    %c0_19 = arith.constant 0 : index
    %c0_20 = arith.constant 0 : index
    %30 = vector.load %arg6[%c0_19, %c0_20] : memref<8x128xf32, #tpu.memory_space<vmem>>, vector<8x128xf32>
    tpu.vector_store %arg6[%c0_19, %c0_20], %29 {strides = array<i32>} : memref<8x128xf32, #tpu.memory_space<vmem>>, vector<8x128xf32>,
    return
  }
  func.func @transform_0(%arg0: i32) -> (i32, i32) {
    %c0_i32 = arith.constant 0 : i32
    %c0_i32_0 = arith.constant 0 : i32
    return %arg0, %c0_i32 : i32, i32
  }
  func.func @transform_1(%arg0: i32) -> (i32, i32) {
    %c0_i32 = arith.constant 0 : i32
    %c0_i32_0 = arith.constant 0 : i32
    %c0_i32_1 = arith.constant 0 : i32
    return %c0_i32, %c0_i32_0 : i32, i32
  }
  func.func @transform_2(%arg0: i32) -> (i32, i32) {
    %c0_i32 = arith.constant 0 : i32
    %c0_i32_0 = arith.constant 0 : i32
    %c0_i32_1 = arith.constant 0 : i32
    return %c0_i32, %c0_i32_0 : i32, i32
  }
  func.func @transform_3(%arg0: i32) -> (i32, i32) {
    %c0_i32 = arith.constant 0 : i32
    %c0_i32_0 = arith.constant 0 : i32
    %c0_i32_1 = arith.constant 0 : i32
    return %c0_i32, %c0_i32_0 : i32, i32
  }
  func.func @transform_4(%arg0: i32) -> (i32, i32) {
    %c0_i32 = arith.constant 0 : i32
    %c0_i32_0 = arith.constant 0 : i32
    %c0_i32_1 = arith.constant 0 : i32
    return %c0_i32, %c0_i32_0 : i32, i32
  }
  func.func @transform_5(%arg0: i32) -> (i32, i32) {
    %c0_i32 = arith.constant 0 : i32
    %c0_i32_0 = arith.constant 0 : i32
    return %arg0, %c0_i32 : i32, i32
  }
}

</mosaic_0001>

<llo_original>
// kernel: tpu_custom_call.1
$region0: #{tpu_custom_call.1}
  #allocation0 [shape = 'u32[]', space=smem, size = 0x4, offset = 0x4, fixed_abs, tag = 'smem constant byte address 0x4 - core index']
  #allocation1 [shape = 'u32[144,128]{1,0:T(1,128)}', space=vmem, size = 0x12000, scoped, tag = 'internal scratch']
  %s0 = inlined_call_operand.hbm [shape: f32[8,16], index: 0, kind: input, shape index: {}]
  %s1 = inlined_call_operand.hbm [shape: f32[16,128], index: 1, kind: input, shape index: {}]
  %s2 = inlined_call_operand.hbm [shape: f32[128,128], index: 2, kind: input, shape index: {}]
  %s3 = inlined_call_operand.hbm [shape: f32[128,128], index: 3, kind: input, shape index: {}]
  %s4 = inlined_call_operand.vmem [shape: f32[4,128], index: 4, kind: input, shape index: {}]
  %s5 = inlined_call_operand.hbm [shape: f32[8,128], index: 5, kind: output, shape index: {}]
  %s6 = sld [smem:[#allocation0]]
  $region46: #{tpu_custom_call.1} parent=0
    _
  %s8 = ssub.s32 1, %s6
  %s9 = scalar_select 0, %s8, %s6
  $region1: #{tpu_custom_call.1} parent=0
    #allocation2 [shape = 'u8[4096]{0}', space=vmem, size = 0x1000, scoped, tag = 'input window, operand 0, single buffered']
    #allocation3 [shape = 's32[1]{0}', space=sflag, size = 0x4, scoped, tag = 'scoped memory for tpu_custom_call.1']
    #allocation4 [shape = 's32[1]{0}', space=sflag, size = 0x4, scoped, tag = 'scoped memory for tpu_custom_call.1']
    #allocation5 [shape = 'u8[8192]{0}', space=vmem, size = 0x2000, scoped, tag = 'input window, operand 1, single buffered']
    #allocation6 [shape = 's32[1]{0}', space=sflag, size = 0x4, scoped, tag = 'scoped memory for tpu_custom_call.1']
    #allocation7 [shape = 'u8[65536]{0}', space=vmem, size = 0x10000, scoped, tag = 'input window, operand 2, single buffered']
    #allocation8 [shape = 'u8[65536]{0}', space=vmem, size = 0x10000, scoped, tag = 'input window, operand 3, single buffered']
    #allocation9 [shape = 's32[1]{0}', space=sflag, size = 0x4, scoped, tag = 'scoped memory for tpu_custom_call.1']
    #allocation10 [shape = 'u8[4096]{0}', space=vmem, size = 0x1000, scoped, tag = 'output window, operand 0, single buffered']
    %10 = vsyncpa [#allocation3], 0
    %11 = vsyncpa [#allocation6], 0
    %12 = vsyncpa [#allocation9], 0
    %13 = vsyncpa [#allocation4], 0
    // Predicated region
    $region2: #{tpu_custom_call.1} parent=1 // pred_check
      _
    $region3: #{tpu_custom_call.1} parent=1 // pred_check_branch
      %15 = sbr.rel (0) target = $region5
    $region4: #{tpu_custom_call.1} parent=1 // pred_region
      %s17 = ssub.s32 128, 128
      %18 = vsyncadd [#allocation3], %s17
      %s20 = sshll.u32 [#allocation2], 4
      %s21 = int_to_ptr.vmem [resolvable:$true] %s20
      %23 = dma.hbm_to_vmem [thread:$0]  %s0, 128, %s21, [#allocation3]
    $region5: #{tpu_custom_call.1} parent=1 // pred_fallthru
      _
    // Predicated region
    $region6: #{tpu_custom_call.1} parent=1 // pred_check
      _
    $region7: #{tpu_custom_call.1} parent=1 // pred_check_branch
      %25 = sbr.rel (0) target = $region9
    $region8: #{tpu_custom_call.1} parent=1 // pred_region
      %s27 = ssub.s32 256, 256
      %28 = vsyncadd [#allocation6], %s27
      %s29 = sshll.u32 [#allocation5], 4
      %s30 = int_to_ptr.vmem [resolvable:$true] %s29
      %35 = dma.hbm_to_vmem [thread:$0]  %s1, 256, %s30, [#allocation6], 128, 128, 8
    $region9: #{tpu_custom_call.1} parent=1 // pred_fallthru
      _
    // Predicated region
    $region10: #{tpu_custom_call.1} parent=1 // pred_check
      _
    $region11: #{tpu_custom_call.1} parent=1 // pred_check_branch
      %37 = sbr.rel (0) target = $region13
    $region12: #{tpu_custom_call.1} parent=1 // pred_region
      %s39 = ssub.s32 2048, 2048
      %40 = vsyncadd [#allocation6], %s39
      %s41 = sshll.u32 [#allocation7], 4
      %s42 = int_to_ptr.vmem [resolvable:$true] %s41
      %47 = dma.hbm_to_vmem [thread:$0]  %s2, 2048, %s42, [#allocation6], 128, 128, 8
    $region13: #{tpu_custom_call.1} parent=1 // pred_fallthru
      _
    // Predicated region
    $region14: #{tpu_custom_call.1} parent=1 // pred_check
      _
    $region15: #{tpu_custom_call.1} parent=1 // pred_check_branch
      %49 = sbr.rel (0) target = $region17
    $region16: #{tpu_custom_call.1} parent=1 // pred_region
      %s51 = ssub.s32 2048, 2048
      %52 = vsyncadd [#allocation9], %s51
      %s53 = sshll.u32 [#allocation8], 4
      %s54 = int_to_ptr.vmem [resolvable:$true] %s53
      %59 = dma.hbm_to_vmem [thread:$0]  %s3, 2048, %s54, [#allocation9], 128, 128, 8
    $region17: #{tpu_custom_call.1} parent=1 // pred_fallthru
      _
    // Predicated region
    $region18: #{tpu_custom_call.1} parent=1 // pred_check
      _
    $region19: #{tpu_custom_call.1} parent=1 // pred_check_branch
      %61 = sbr.rel (0) target = $region21
    $region20: #{tpu_custom_call.1} parent=1 // pred_region
      _
    $region21: #{tpu_custom_call.1} parent=1 // pred_fallthru
      _
    // Predicated region
    $region22: #{tpu_custom_call.1} parent=1 // pred_check
      _
    $region23: #{tpu_custom_call.1} parent=1 // pred_check_branch
      %63 = sbr.rel (0) target = $region25
    $region24: #{tpu_custom_call.1} parent=1 // pred_region
      %64 = dma.done [#allocation3], 128
    $region25: #{tpu_custom_call.1} parent=1 // pred_fallthru
      _
    // Predicated region
    $region26: #{tpu_custom_call.1} parent=1 // pred_check
      _
    $region27: #{tpu_custom_call.1} parent=1 // pred_check_branch
      %66 = sbr.rel (0) target = $region29
    $region28: #{tpu_custom_call.1} parent=1 // pred_region
      %67 = dma.done [#allocation6], 256
    $region29: #{tpu_custom_call.1} parent=1 // pred_fallthru
      _
    // Predicated region
    $region30: #{tpu_custom_call.1} parent=1 // pred_check
      _
    $region31: #{tpu_custom_call.1} parent=1 // pred_check_branch
      %69 = sbr.rel (0) target = $region33
    $region32: #{tpu_custom_call.1} parent=1 // pred_region
      %70 = dma.done [#allocation6], 2048
    $region33: #{tpu_custom_call.1} parent=1 // pred_fallthru
      _
    // Predicated region
    $region34: #{tpu_custom_call.1} parent=1 // pred_check
      _
    $region35: #{tpu_custom_call.1} parent=1 // pred_check_branch
      %72 = sbr.rel (0) target = $region37
    $region36: #{tpu_custom_call.1} parent=1 // pred_region
      %73 = dma.done [#allocation9], 2048
    $region37: #{tpu_custom_call.1} parent=1 // pred_fallthru
      _
    %v74 = vld [vmem:[#allocation5] sm:$0xff]
    %v75 = vld [vmem:[#allocation5 + $0x8] sm:$0xff]
    %v76 = vld [vmem:[#allocation7] sm:$0xff]
    %v77 = vld [vmem:[#allocation7 + $0x8] sm:$0xff]
    %v78 = vld [vmem:[#allocation7 + $0x10] sm:$0xff]
    %v79 = vld [vmem:[#allocation7 + $0x18] sm:$0xff]
    %v80 = vld [vmem:[#allocation7 + $0x20] sm:$0xff]
    %v81 = vld [vmem:[#allocation7 + $0x28] sm:$0xff]
    %v82 = vld [vmem:[#allocation7 + $0x30] sm:$0xff]
    %v83 = vld [vmem:[#allocation7 + $0x38] sm:$0xff]
    %v84 = vld [vmem:[#allocation7 + $0x40] sm:$0xff]
    %v85 = vld [vmem:[#allocation7 + $0x48] sm:$0xff]
    %v86 = vld [vmem:[#allocation7 + $0x50] sm:$0xff]
    %v87 = vld [vmem:[#allocation7 + $0x58] sm:$0xff]
    %v88 = vld [vmem:[#allocation7 + $0x60] sm:$0xff]
    %v89 = vld [vmem:[#allocation7 + $0x68] sm:$0xff]
    %v90 = vld [vmem:[#allocation7 + $0x70] sm:$0xff]
    %v91 = vld [vmem:[#allocation7 + $0x78] sm:$0xff]
    %v92 = vld [vmem:[#allocation8] sm:$0xff]
    %v93 = vld [vmem:[#allocation8 + $0x8] sm:$0xff]
    %v94 = vld [vmem:[#allocation8 + $0x10] sm:$0xff]
    %v95 = vld [vmem:[#allocation8 + $0x18] sm:$0xff]
    %v96 = vld [vmem:[#allocation8 + $0x20] sm:$0xff]
    %v97 = vld [vmem:[#allocation8 + $0x28] sm:$0xff]
    %v98 = vld [vmem:[#allocation8 + $0x30] sm:$0xff]
    %v99 = vld [vmem:[#allocation8 + $0x38] sm:$0xff]
    %v100 = vld [vmem:[#allocation8 + $0x40] sm:$0xff]
    %v101 = vld [vmem:[#allocation8 + $0x48] sm:$0xff]
    %v102 = vld [vmem:[#allocation8 + $0x50] sm:$0xff]
    %v103 = vld [vmem:[#allocation8 + $0x58] sm:$0xff]
    %v104 = vld [vmem:[#allocation8 + $0x60] sm:$0xff]
    %v105 = vld [vmem:[#allocation8 + $0x68] sm:$0xff]
    %v106 = vld [vmem:[#allocation8 + $0x70] sm:$0xff]
    %v107 = vld [vmem:[#allocation8 + $0x78] sm:$0xff]
    %v108 = vld [vmem:[#allocation2] sm:$0xff]
    %v109 = vld [vmem:[%s4] sm:$0x1]
    %v110 = vlaneseq
    %v111 = vshrl.u32 %v110, 7
    %v112 = vsub.s32 0, %v111
    %v113 = vrot.slane %v109, %v112
    %vm114 = vcmask 130048
    %v116 = vsel %vm114, %v108, 0
    %118 = vmatprep.subr.mxu0 0.0
    %119 = vmatpush1.msra.mxu0 %v74
    %120 = vmatprep.subr.mxu0 0.0
    %121 = vmatpush1.msra.mxu0 %v75
    %122 = vmatprep.subr.mxu0 0.0
    %123 = vmatpush1.msra.mxu0 0.0
    %124 = vmatprep.subr.mxu0 0.0
    %125 = vmatpush1.msra.mxu0 0.0
    %126 = vmatprep.subr.mxu0 0.0
    %127 = vmatpush1.msra.mxu0 0.0
    %128 = vmatprep.subr.mxu0 0.0
    %129 = vmatpush1.msra.mxu0 0.0
    %130 = vmatprep.subr.mxu0 0.0
    %131 = vmatpush1.msra.mxu0 0.0
    %132 = vmatprep.subr.mxu0 0.0
    %133 = vmatpush1.msra.mxu0 0.0
    %134 = vmatprep.subr.mxu0 0.0
    %135 = vmatpush1.msra.mxu0 0.0
    %136 = vmatprep.subr.mxu0 0.0
    %137 = vmatpush1.msra.mxu0 0.0
    %138 = vmatprep.subr.mxu0 0.0
    %139 = vmatpush1.msra.mxu0 0.0
    %140 = vmatprep.subr.mxu0 0.0
    %141 = vmatpush1.msra.mxu0 0.0
    %142 = vmatprep.subr.mxu0 0.0
    %143 = vmatpush1.msra.mxu0 0.0
    %144 = vmatprep.subr.mxu0 0.0
    %145 = vmatpush1.msra.mxu0 0.0
    %146 = vmatprep.subr.mxu0 0.0
    %147 = vmatpush1.msra.mxu0 0.0
    %148 = vmatprep.subr.mxu0 0.0
    %149 = vmatpush1.msra.mxu0 0.0
    %150 = vmatprep.subr.mxu0 0.0
    %151 = vmatpush1.msra.mxu0 0.0
    %152 = vmatprep.subr.mxu0 0.0
    %153 = vmatpush1.msra.mxu0 0.0
    %154 = vmatprep.subr.mxu0 0.0
    %155 = vmatpush1.msra.mxu0 0.0
    %156 = vmatprep.subr.mxu0 0.0
    %157 = vmatpush1.msra.mxu0 0.0
    %158 = vmatprep.subr.mxu0 0.0
    %159 = vmatpush1.msra.mxu0 0.0
    %160 = vmatprep.subr.mxu0 0.0
    %161 = vmatpush1.msra.mxu0 0.0
    %162 = vmatprep.subr.mxu0 0.0
    %163 = vmatpush1.msra.mxu0 0.0
    %164 = vmatprep.subr.mxu0 0.0
    %165 = vmatpush1.msra.mxu0 0.0
    %166 = vmatprep.subr.mxu0 0.0
    %167 = vmatpush1.msra.mxu0 0.0
    %168 = vmatprep.subr.mxu0 0.0
    %169 = vmatpush1.msra.mxu0 0.0
    %170 = vmatprep.subr.mxu0 0.0
    %171 = vmatpush1.msra.mxu0 0.0
    %172 = vmatprep.subr.mxu0 0.0
    %173 = vmatpush1.msra.mxu0 0.0
    %174 = vmatprep.subr.mxu0 0.0
    %175 = vmatpush1.msra.mxu0 0.0
    %176 = vmatprep.subr.mxu0 0.0
    %177 = vmatpush1.msra.mxu0 0.0
    %178 = vmatprep.subr.mxu0 0.0
    %179 = vmatpush1.msra.mxu0 0.0
    %180 = vmatprep.subr.mxu0 0.0
    %181 = vmatpush1.msra.mxu0 0.0
    %182 = vmatprep.mubr.f32.mxu0 0.0
    %183 = vmatmul.mubr.f32.gmra.mrb[0].mxu0 %v116
    %v184 = vpop.f32.mrb[0].mxu0
    %v185 = vadd.f32 %v113, %v184
    %v186 = vpop.f32.mrb[0].mxu0
    %187 = vdwg.mxu0
    %v188 = vmax.f32 %v185, 0.0
    %v189 = vld [vmem:[%s4 + $0x1] sm:$0x1]
    %v190 = vlaneseq
    %v191 = vshrl.u32 %v190, 7
    %v192 = vsub.s32 0, %v191
    %v193 = vrot.slane %v189, %v192
    %194 = vmatprep.subr.mxu0 0.0
    %195 = vmatpush1.msra.mxu0 %v76
    %196 = vmatprep.subr.mxu0 0.0
    %197 = vmatpush1.msra.mxu0 %v77
    %198 = vmatprep.subr.mxu0 0.0
    %199 = vmatpush1.msra.mxu0 %v78
    %200 = vmatprep.subr.mxu0 0.0
    %201 = vmatpush1.msra.mxu0 %v79
    %202 = vmatprep.subr.mxu0 0.0
    %203 = vmatpush1.msra.mxu0 %v80
    %204 = vmatprep.subr.mxu0 0.0
    %205 = vmatpush1.msra.mxu0 %v81
    %206 = vmatprep.subr.mxu0 0.0
    %207 = vmatpush1.msra.mxu0 %v82
    %208 = vmatprep.subr.mxu0 0.0
    %209 = vmatpush1.msra.mxu0 %v83
    %210 = vmatprep.subr.mxu0 0.0
    %211 = vmatpush1.msra.mxu0 %v84
    %212 = vmatprep.subr.mxu0 0.0
    %213 = vmatpush1.msra.mxu0 %v85
    %214 = vmatprep.subr.mxu0 0.0
    %215 = vmatpush1.msra.mxu0 %v86
    %216 = vmatprep.subr.mxu0 0.0
    %217 = vmatpush1.msra.mxu0 %v87
    %218 = vmatprep.subr.mxu0 0.0
    %219 = vmatpush1.msra.mxu0 %v88
    %220 = vmatprep.subr.mxu0 0.0
    %221 = vmatpush1.msra.mxu0 %v89
    %222 = vmatprep.subr.mxu0 0.0
    %223 = vmatpush1.msra.mxu0 %v90
    %224 = vmatprep.subr.mxu0 0.0
    %225 = vmatpush1.msra.mxu0 %v91
    %226 = vmatprep.subr.mxu0 0.0
    %227 = vmatpush1.msra.mxu0 0.0
    %228 = vmatprep.subr.mxu0 0.0
    %229 = vmatpush1.msra.mxu0 0.0
    %230 = vmatprep.subr.mxu0 0.0
    %231 = vmatpush1.msra.mxu0 0.0
    %232 = vmatprep.subr.mxu0 0.0
    %233 = vmatpush1.msra.mxu0 0.0
    %234 = vmatprep.subr.mxu0 0.0
    %235 = vmatpush1.msra.mxu0 0.0
    %236 = vmatprep.subr.mxu0 0.0
    %237 = vmatpush1.msra.mxu0 0.0
    %238 = vmatprep.subr.mxu0 0.0
    %239 = vmatpush1.msra.mxu0 0.0
    %240 = vmatprep.subr.mxu0 0.0
    %241 = vmatpush1.msra.mxu0 0.0
    %242 = vmatprep.subr.mxu0 0.0
    %243 = vmatpush1.msra.mxu0 0.0
    %244 = vmatprep.subr.mxu0 0.0
    %245 = vmatpush1.msra.mxu0 0.0
    %246 = vmatprep.subr.mxu0 0.0
    %247 = vmatpush1.msra.mxu0 0.0
    %248 = vmatprep.subr.mxu0 0.0
    %249 = vmatpush1.msra.mxu0 0.0
    %250 = vmatprep.subr.mxu0 0.0
    %251 = vmatpush1.msra.mxu0 0.0
    %252 = vmatprep.subr.mxu0 0.0
    %253 = vmatpush1.msra.mxu0 0.0
    %254 = vmatprep.subr.mxu0 0.0
    %255 = vmatpush1.msra.mxu0 0.0
    %256 = vmatprep.subr.mxu0 0.0
    %257 = vmatpush1.msra.mxu0 0.0
    %258 = vmatprep.mubr.f32.mxu0 0.0
    %259 = vmatmul.mubr.f32.gmra.mrb[0].mxu0 %v188
    %v260 = vpop.f32.mrb[0].mxu0
    %v261 = vadd.f32 %v193, %v260
    %v262 = vpop.f32.mrb[0].mxu0
    %263 = vdwg.mxu0
    %v264 = vmax.f32 %v261, 0.0
    %v265 = vld [vmem:[%s4 + $0x2] sm:$0x1]
    %v266 = vlaneseq
    %v267 = vshrl.u32 %v266, 7
    %v268 = vsub.s32 0, %v267
    %v269 = vrot.slane %v265, %v268
    %270 = vmatprep.subr.mxu0 0.0
    %271 = vmatpush1.msra.mxu0 %v92
    %272 = vmatprep.subr.mxu0 0.0
    %273 = vmatpush1.msra.mxu0 %v93
    %274 = vmatprep.subr.mxu0 0.0
    %275 = vmatpush1.msra.mxu0 %v94
    %276 = vmatprep.subr.mxu0 0.0
    %277 = vmatpush1.msra.mxu0 %v95
    %278 = vmatprep.subr.mxu0 0.0
    %279 = vmatpush1.msra.mxu0 %v96
    %280 = vmatprep.subr.mxu0 0.0
    %281 = vmatpush1.msra.mxu0 %v97
    %282 = vmatprep.subr.mxu0 0.0
    %283 = vmatpush1.msra.mxu0 %v98
    %284 = vmatprep.subr.mxu0 0.0
    %285 = vmatpush1.msra.mxu0 %v99
    %286 = vmatprep.subr.mxu0 0.0
    %287 = vmatpush1.msra.mxu0 %v100
    %288 = vmatprep.subr.mxu0 0.0
    %289 = vmatpush1.msra.mxu0 %v101
    %290 = vmatprep.subr.mxu0 0.0
    %291 = vmatpush1.msra.mxu0 %v102
    %292 = vmatprep.subr.mxu0 0.0
    %293 = vmatpush1.msra.mxu0 %v103
    %294 = vmatprep.subr.mxu0 0.0
    %295 = vmatpush1.msra.mxu0 %v104
    %296 = vmatprep.subr.mxu0 0.0
    %297 = vmatpush1.msra.mxu0 %v105
    %298 = vmatprep.subr.mxu0 0.0
    %299 = vmatpush1.msra.mxu0 %v106
    %300 = vmatprep.subr.mxu0 0.0
    %301 = vmatpush1.msra.mxu0 %v107
    %302 = vmatprep.subr.mxu0 0.0
    %303 = vmatpush1.msra.mxu0 0.0
    %304 = vmatprep.subr.mxu0 0.0
    %305 = vmatpush1.msra.mxu0 0.0
    %306 = vmatprep.subr.mxu0 0.0
    %307 = vmatpush1.msra.mxu0 0.0
    %308 = vmatprep.subr.mxu0 0.0
    %309 = vmatpush1.msra.mxu0 0.0
    %310 = vmatprep.subr.mxu0 0.0
    %311 = vmatpush1.msra.mxu0 0.0
    %312 = vmatprep.subr.mxu0 0.0
    %313 = vmatpush1.msra.mxu0 0.0
    %314 = vmatprep.subr.mxu0 0.0
    %315 = vmatpush1.msra.mxu0 0.0
    %316 = vmatprep.subr.mxu0 0.0
    %317 = vmatpush1.msra.mxu0 0.0
    %318 = vmatprep.subr.mxu0 0.0
    %319 = vmatpush1.msra.mxu0 0.0
    %320 = vmatprep.subr.mxu0 0.0
    %321 = vmatpush1.msra.mxu0 0.0
    %322 = vmatprep.subr.mxu0 0.0
    %323 = vmatpush1.msra.mxu0 0.0
    %324 = vmatprep.subr.mxu0 0.0
    %325 = vmatpush1.msra.mxu0 0.0
    %326 = vmatprep.subr.mxu0 0.0
    %327 = vmatpush1.msra.mxu0 0.0
    %328 = vmatprep.subr.mxu0 0.0
    %329 = vmatpush1.msra.mxu0 0.0
    %330 = vmatprep.subr.mxu0 0.0
    %331 = vmatpush1.msra.mxu0 0.0
    %332 = vmatprep.subr.mxu0 0.0
    %333 = vmatpush1.msra.mxu0 0.0
    %334 = vmatprep.mubr.f32.mxu0 0.0
    %335 = vmatmul.mubr.f32.gmra.mrb[0].mxu0 %v264
    %v336 = vpop.f32.mrb[0].mxu0
    %v337 = vadd.f32 %v269, %v336
    %v338 = vpop.f32.mrb[0].mxu0
    %339 = vdwg.mxu0
    %v340 = vld [vmem:[%s4 + $0x3] sm:$0x1]
    %v341 = vmax.f32 %v337, -20.0
    %v342 = vmin.f32 %v341, 2.0
    %vm343 = vcmp.gt.f32.partialorder %v340, 0.5
    %v344 = vsel %vm343, 1, 0
    %v345 = vlaneseq
    %v346 = vshrl.u32 %v345, 7
    %v347 = vsub.s32 0, %v346
    %v348 = vrot.slane %v344, %v347
    %vm349 = vcmp.eq.s32.totalorder %v348, 1
    %v350 = vsel %vm349, %v342, %v337
    %351 = vst [vmem:[#allocation10] sm:$0xff] %v350
    // Predicated region
    $region38: #{tpu_custom_call.1} parent=1 // pred_check
      _
    $region39: #{tpu_custom_call.1} parent=1 // pred_check_branch
      %353 = sbr.rel (0) target = $region41
    $region40: #{tpu_custom_call.1} parent=1 // pred_region
      %s355 = ssub.s32 128, 128
      %356 = vsyncadd [#allocation4], %s355
      %s358 = sshll.u32 [#allocation10], 4
      %s359 = int_to_ptr.vmem [resolvable:$true] %s358
      %361 = dma.vmem_to_hbm [thread:$0]  %s359, 128, %s5, [#allocation4]
    $region41: #{tpu_custom_call.1} parent=1 // pred_fallthru
      _
    // Predicated region
    $region42: #{tpu_custom_call.1} parent=1 // pred_check
      _
    $region43: #{tpu_custom_call.1} parent=1 // pred_check_branch
      %363 = sbr.rel (0) target = $region45
    $region44: #{tpu_custom_call.1} parent=1 // pred_region
      %364 = dma.done [#allocation4], 128
    $region45: #{tpu_custom_call.1} parent=1 // pred_fallthru
      _
    %365 = vsyncpa [#allocation3], 1
    %366 = vsyncpa [#allocation6], 1
    %367 = vsyncpa [#allocation9], 1
    %368 = vsyncpa [#allocation4], 1

</llo_original>
